<compile_context>
chip_gen: v6e
topology: v6e:2x2x1
jax: 0.10.0
libtpu: 0.0.40
codegen_flags: <defaults>
</compile_context>

<pallas_src>
import jax
import jax.numpy as jnp
from jax import lax
from jax.experimental import pallas as pl
from jax.experimental.pallas import tpu as pltpu

INPUT_SIZE = 784
NUM_CLASSES = 10

# Below this batch size the grid would be a single step: no pipelining to
# exploit, so plain XLA is faster (per perf review).
_SMALL_BATCH_XLA_THRESHOLD = 512


def _round_up(x, m):
    return ((x + m - 1) // m) * m


def _linear_kernel(x_ref, wt_ref, b_ref, o_ref):
    # x_ref : (TM, 784)   batch tile (pipelined)
    # wt_ref: (784, 10)   pre-transposed weight, VMEM-resident
    # b_ref : (1, 10)     bias, VMEM-resident
    # o_ref : (TM, 10)
    acc = lax.dot_general(
        x_ref[...], wt_ref[...],
        dimension_numbers=(((1,), (0,)), ((), ())),   # canonical K-contraction
        preferred_element_type=jnp.float32,
    )
    o_ref[...] = (acc + b_ref[...]).astype(o_ref.dtype)


def net_forward(x, weight, bias, *, tm=2048, use_pallas=None):
    """Forward pass of Net: out = x @ weight.T + bias.

    x:      (B, 784) float32
    weight: (10, 784) float32   (PyTorch nn.Linear convention, NOT transposed)
    bias:   (10,)    float32
    tm:     batch tile for the Pallas path (multiple of 8; 2048 default)
    use_pallas: None = auto (Pallas only for large B), True/False = force
    returns (B, 10) float32
    """
    B = x.shape[0]
    if use_pallas is None:
        use_pallas = B >= _SMALL_BATCH_XLA_THRESHOLD
    if not use_pallas:
        # Small-batch fast path: single-tile Pallas launch would be pure overhead.
        return x @ weight.T + bias

    # Batch tile: multiple of 8 (sublane), capped at `tm`.
    # At TM=2048 one x buffer is ~7 MiB (lane-padded 784->896), ~16 MiB
    # double-buffered incl. output -> fits the 32 MiB limit set below.
    TM = min(tm, _round_up(B, 8))
    grid = (pl.cdiv(B, TM),)

    # One-time ~31 KB transpose in the wrapper (constant-folded for static
    # weights); keeps the MXU feed canonical inside the kernel.
    w_t = weight.T                          # (784, 10)
    b2 = bias.reshape(1, NUM_CLASSES)       # (1, 10) for in-kernel broadcast

    cost = pl.CostEstimate(
        flops=2 * B * INPUT_SIZE * NUM_CLASSES,
        bytes_accessed=4 * (B * INPUT_SIZE + B * NUM_CLASSES
                            + INPUT_SIZE * NUM_CLASSES + NUM_CLASSES),
        transcendentals=0,
    )

    return pl.pallas_call(
        _linear_kernel,
        out_shape=jax.ShapeDtypeStruct((B, NUM_CLASSES), x.dtype),
        grid=grid,
        in_specs=[
            # x: tiled over batch, software-pipelined tile-by-tile.
            pl.BlockSpec((TM, INPUT_SIZE), lambda i: (i, 0)),
            # weight^T: full, VMEM-resident across all grid steps.
            pl.BlockSpec((INPUT_SIZE, NUM_CLASSES), lambda i: (0, 0)),
            # bias: full, VMEM-resident.
            pl.BlockSpec((1, NUM_CLASSES), lambda i: (0, 0)),
        ],
        # HBM output kept narrow at (B, 10); masked stores cost only slack
        # store/VPU slots, padding to 128 lanes would add HBM write traffic.
        out_specs=pl.BlockSpec((TM, NUM_CLASSES), lambda i: (i, 0)),
        compiler_params=pltpu.CompilerParams(
            dimension_semantics=("parallel",),
            # 32 MiB: lets TM=2048 double-buffer on v5e (16 MiB scoped default)
            # while staying well inside v7x's 64 MiB physical VMEM per TC.
            vmem_limit_bytes=32 << 20,
        ),
        cost_estimate=cost,
    )(x, w_t, b2)


def init_params(key):
    """Deterministic init matching nn.Linear's default U(-1/sqrt(in), 1/sqrt(in))."""
    kw, kb = jax.random.split(key)
    bound = 1.0 / (INPUT_SIZE ** 0.5)
    weight = jax.random.uniform(
        kw, (NUM_CLASSES, INPUT_SIZE), jnp.float32, minval=-bound, maxval=bound)
    bias = jax.random.uniform(
        kb, (NUM_CLASSES,), jnp.float32, minval=-bound, maxval=bound)
    return weight, bias


if __name__ == "__main__":
    key = jax.random.PRNGKey(0)
    kx, kp = jax.random.split(key)
    weight, bias = init_params(kp)

    # 1) Small batch: wrapper auto-routes to the XLA fast path (grid would be 1).
    x_small = jax.random.normal(kx, (8, INPUT_SIZE), jnp.float32)
    out_small = net_forward(x_small, weight, bias)
    jax.block_until_ready(out_small)
    ref_small = x_small @ weight.T + bias
    assert out_small.shape == (8, NUM_CLASSES)
    assert jnp.allclose(out_small, ref_small, atol=1e-4, rtol=1e-4)

    # 2) Exercise the Pallas kernel at a small shape: force the Pallas path with
    #    a small tile (TM=128) so grid=2 and the last tile is ragged (136 % 128),
    #    validating Pallas boundary masking flagged in the review.
    B = 136
    x = jax.random.normal(kx, (B, INPUT_SIZE), jnp.float32)
    out = net_forward(x, weight, bias, tm=128, use_pallas=True)
    jax.block_until_ready(out)
    ref = x @ weight.T + bias
    assert out.shape == (B, NUM_CLASSES)
    assert jnp.allclose(out, ref, atol=1e-4, rtol=1e-4)

    print("KERNEL_OK")
</pallas_src>

<mosaic_0001>
module attributes {stable_mosaic.version = 11 : i64} {
  func.func @_linear_kernel(%arg0: i32, %arg1: memref<128x784xf32, #tpu.memory_space<vmem>>, %arg2: memref<784x10xf32, #tpu.memory_space<vmem>>, %arg3: memref<1x10xf32, #tpu.memory_space<vmem>>, %arg4: memref<128x10xf32, #tpu.memory_space<vmem>>) attributes {dimension_semantics = [#tpu.dimension_semantics<parallel>], iteration_bounds = array<i64: 2>, scalar_prefetch = 0 : i64, scratch_operands = 0 : i64, tpu.core_type = #tpu.core_type<tc>, window_params = [{transform_indices = @transform_0, window_bounds = array<i64: 128, 784>}, {pipeline_mode = #tpu.pipeline_mode<synchronous>, transform_indices = @transform_1, window_bounds = array<i64: 784, 10>}, {pipeline_mode = #tpu.pipeline_mode<synchronous>, transform_indices = @transform_2, window_bounds = array<i64: 1, 10>}, {transform_indices = @transform_3, window_bounds = array<i64: 128, 10>}]} {
    %c0 = arith.constant 0 : index
    %c0_0 = arith.constant 0 : index
    %0 = vector.load %arg1[%c0, %c0_0] : memref<128x784xf32, #tpu.memory_space<vmem>>, vector<128x784xf32>
    %c0_1 = arith.constant 0 : index
    %c0_2 = arith.constant 0 : index
    %1 = vector.load %arg2[%c0_1, %c0_2] : memref<784x10xf32, #tpu.memory_space<vmem>>, vector<784x10xf32>
    %cst = arith.constant dense<0.000000e+00> : vector<128x10xf32>
    %2 = tpu.matmul %0, %1, %cst {dimension_numbers = #tpu.dot_dimension_numbers<[1], [0], [0], [1], [0, 0, 1, 1], [], []>} : vector<128x784xf32>, vector<784x10xf32>, vector<128x10xf32> -> vector<128x10xf32>
    %c0_3 = arith.constant 0 : index
    %c0_4 = arith.constant 0 : index
    %3 = vector.load %arg3[%c0_3, %c0_4] : memref<1x10xf32, #tpu.memory_space<vmem>>, vector<1x10xf32>
    %4 = vector.broadcast %3 : vector<1x10xf32> to vector<128x10xf32>
    %5 = arith.addf %2, %4 : vector<128x10xf32>
    %c0_5 = arith.constant 0 : index
    %c0_6 = arith.constant 0 : index
    %6 = vector.load %arg4[%c0_5, %c0_6] : memref<128x10xf32, #tpu.memory_space<vmem>>, vector<128x10xf32>
    tpu.vector_store %arg4[%c0_5, %c0_6], %5 {strides = array<i32>} : memref<128x10xf32, #tpu.memory_space<vmem>>, vector<128x10xf32>,
    return
  }
  func.func @transform_0(%arg0: i32) -> (i32, i32) {
    %c0_i32 = arith.constant 0 : i32
    %c0_i32_0 = arith.constant 0 : i32
    return %arg0, %c0_i32 : i32, i32
  }
  func.func @transform_1(%arg0: i32) -> (i32, i32) {
    %c0_i32 = arith.constant 0 : i32
    %c0_i32_0 = arith.constant 0 : i32
    %c0_i32_1 = arith.constant 0 : i32
    return %c0_i32, %c0_i32_0 : i32, i32
  }
  func.func @transform_2(%arg0: i32) -> (i32, i32) {
    %c0_i32 = arith.constant 0 : i32
    %c0_i32_0 = arith.constant 0 : i32
    %c0_i32_1 = arith.constant 0 : i32
    return %c0_i32, %c0_i32_0 : i32, i32
  }
  func.func @transform_3(%arg0: i32) -> (i32, i32) {
    %c0_i32 = arith.constant 0 : i32
    %c0_i32_0 = arith.constant 0 : i32
    return %arg0, %c0_i32 : i32, i32
  }
}

</mosaic_0001>

<llo_original>
// kernel: tpu_custom_call.1
$region0: #{tpu_custom_call.1}
  #allocation0 [shape = 'u32[]', space=smem, size = 0x4, offset = 0x4, fixed_abs, tag = 'smem constant byte address 0x4 - core index']
  #allocation1 [shape = 'u32[144,128]{1,0:T(1,128)}', space=vmem, size = 0x12000, scoped, tag = 'internal scratch']
  %s0 = inlined_call_operand.hbm [shape: f32[136,784], index: 0, kind: input, shape index: {}]
  %s1 = inlined_call_operand.vmem [shape: f32[784,10], index: 1, kind: input, shape index: {}]
  %s2 = inlined_call_operand.vmem [shape: f32[1,10], index: 2, kind: input, shape index: {}]
  %s3 = inlined_call_operand.vmem [shape: f32[136,10], index: 3, kind: output, shape index: {}]
  %s4 = sld [smem:[#allocation0]]
  $region97: #{tpu_custom_call.1} parent=0
    _
  %s6 = ssub.s32 1, %s4
  %s7 = scalar_select 0, %s6, %s4
  $region1: #{tpu_custom_call.1} parent=0
    #allocation2 [shape = 'u8[917504]{0}', space=vmem, size = 0xe0000, scoped, tag = 'input window, operand 0']
    #allocation3 [shape = 's32[2]{0}', space=sflag, size = 0x8, scoped, tag = 'scoped memory for tpu_custom_call.1']
    #allocation4 [shape = 'u8[131072]{0}', space=vmem, size = 0x20000, scoped, tag = 'output window, operand 0']
    %8 = vsyncpa [#allocation3], 0
    %s9 = scalar_lea.sflag [#allocation3], 1
    %10 = vsyncpa %s9, 0
    loop: start=0, step=1, limit=4
    $region2: #{tpu_custom_call.1} parent=1 // loop_pre_header
      _
    $region3: #{tpu_custom_call.1} parent=1 // loop_header
      %s12 = sphi 0, %s16
      %p13 = scmp.ge.s32.totalorder %s12, 4
      %s22 = sphi 0, %s24
      %s25 = sphi 0, %s22
      %s26 = sphi 0, %s25
      %s42 = sphi 0, %s26
      %s46 = sphi 0, %s46
      %s48 = sphi 0, %s46
      %s49 = sphi 0, %s48
      %s63 = sphi 0, %s49
      %s67 = sphi 0, %s67
      %s69 = sphi 0, %s67
      %s70 = sphi 0, %s69
      %s84 = sphi 0, %s70
      %s90 = sphi 0, %s92
      %s93 = sphi 0, %s90
      %s94 = sphi 0, %s93
      %s110 = sphi 0, %s94
    $region4: #{tpu_custom_call.1} parent=1 // loop_header_branch
      %15 = sbr.rel (%p13) target = $region8
    $region5: #{tpu_custom_call.1} parent=1 // loop_body
      %s17 = ssub.s32 %s12, 1
      %s18 = ssub.s32 %s12, 2
      %s19 = sadd.s32 %s12, 1
      %s20 = ssub.s32 %s12, %s19
      %p21 = scmp.eq.s32.totalorder %s20, 0
      %s23 = sadd.s32 %s22, 1
      %s24 = scalar_select %p21, %s22, %s23
      %p27 = pneg %p21
      %p28 = scmp.eq.s32.totalorder %s12, 1
      %p29 = por %p27, %p28
      %p30 = scmp.ne.s32.totalorder %s22, %s25
      %p31 = scmp.eq.s32.totalorder %s12, 0
      %p32 = por %p30, %p31
      %p33 = scmp.ne.s32.totalorder %s22, %s25
      %p34 = scmp.eq.s32.totalorder %s17, 1
      %p35 = por %p33, %p34
      %p36 = scmp.ne.s32.totalorder %s25, %s26
      %p37 = scmp.eq.s32.totalorder %s17, 0
      %p38 = por %p36, %p37
      %p39 = scmp.ne.s32.totalorder %s25, %s26
      %p40 = scmp.eq.s32.totalorder %s18, 1
      %p41 = por %p39, %p40
      %p43 = scmp.ne.s32.totalorder %s26, %s42
      %p44 = scmp.eq.s32.totalorder %s18, 0
      %p45 = por %p43, %p44
      %s47 = sadd.s32 %s46, 1
      %p50 = scmp.eq.s32.totalorder %s12, 1
      %p51 = scmp.ne.s32.totalorder %s46, %s48
      %p52 = scmp.eq.s32.totalorder %s12, 0
      %p53 = por %p51, %p52
      %p54 = scmp.ne.s32.totalorder %s46, %s48
      %p55 = scmp.eq.s32.totalorder %s17, 1
      %p56 = por %p54, %p55
      %p57 = scmp.ne.s32.totalorder %s48, %s49
      %p58 = scmp.eq.s32.totalorder %s17, 0
      %p59 = por %p57, %p58
      %p60 = scmp.ne.s32.totalorder %s48, %s49
      %p61 = scmp.eq.s32.totalorder %s18, 1
      %p62 = por %p60, %p61
      %p64 = scmp.ne.s32.totalorder %s49, %s63
      %p65 = scmp.eq.s32.totalorder %s18, 0
      %p66 = por %p64, %p65
      %s68 = sadd.s32 %s67, 1
      %p71 = scmp.eq.s32.totalorder %s12, 1
      %p72 = scmp.ne.s32.totalorder %s67, %s69
      %p73 = scmp.eq.s32.totalorder %s12, 0
      %p74 = por %p72, %p73
      %p75 = scmp.ne.s32.totalorder %s67, %s69
      %p76 = scmp.eq.s32.totalorder %s17, 1
      %p77 = por %p75, %p76
      %p78 = scmp.ne.s32.totalorder %s69, %s70
      %p79 = scmp.eq.s32.totalorder %s17, 0
      %p80 = por %p78, %p79
      %p81 = scmp.ne.s32.totalorder %s69, %s70
      %p82 = scmp.eq.s32.totalorder %s18, 1
      %p83 = por %p81, %p82
      %p85 = scmp.ne.s32.totalorder %s70, %s84
      %p86 = scmp.eq.s32.totalorder %s18, 0
      %p87 = por %p85, %p86
      %s88 = ssub.s32 %s12, %s19
      %p89 = scmp.eq.s32.totalorder %s88, 0
      %s91 = sadd.s32 %s90, 1
      %s92 = scalar_select %p89, %s90, %s91
      %p95 = pneg %p89
      %p96 = scmp.eq.s32.totalorder %s12, 1
      %p97 = por %p95, %p96
      %p98 = scmp.ne.s32.totalorder %s90, %s93
      %p99 = scmp.eq.s32.totalorder %s12, 0
      %p100 = por %p98, %p99
      %p101 = scmp.ne.s32.totalorder %s90, %s93
      %p102 = scmp.eq.s32.totalorder %s17, 1
      %p103 = por %p101, %p102
      %p104 = scmp.ne.s32.totalorder %s93, %s94
      %p105 = scmp.eq.s32.totalorder %s17, 0
      %p106 = por %p104, %p105
      %p107 = scmp.ne.s32.totalorder %s93, %s94
      %p108 = scmp.eq.s32.totalorder %s18, 1
      %p109 = por %p107, %p108
      %p111 = scmp.ne.s32.totalorder %s94, %s110
      %p112 = scmp.eq.s32.totalorder %s18, 0
      %p113 = por %p111, %p112
      %p114 = scmp.le.s32.totalorder 1, %s12
      %p115 = scmp.lt.s32.totalorder %s12, 3
      %p116 = pnand %p114, %p115
      %p117 = pneg %p116
      // Predicated region
      $region9: #{tpu_custom_call.1} parent=5 // pred_check
        _
      $region10: #{tpu_custom_call.1} parent=5 // pred_check_branch
        %119 = sbr.rel (%p116) target = $region12
      $region11: #{tpu_custom_call.1} parent=5 // pred_region
        %s120 = ssub.s32 %s12, 1
        // Predicated region
        $region13: #{tpu_custom_call.1} parent=11 // pred_check
          %p121 = pneg %p59
        $region14: #{tpu_custom_call.1} parent=11 // pred_check_branch
          %123 = sbr.rel (%p121) target = $region16
        $region15: #{tpu_custom_call.1} parent=11 // pred_region
          _
        $region16: #{tpu_custom_call.1} parent=11 // pred_fallthru
          _
        // Predicated region
        $region17: #{tpu_custom_call.1} parent=11 // pred_check
          %p124 = pneg %p80
        $region18: #{tpu_custom_call.1} parent=11 // pred_check_branch
          %126 = sbr.rel (%p124) target = $region20
        $region19: #{tpu_custom_call.1} parent=11 // pred_region
          _
        $region20: #{tpu_custom_call.1} parent=11 // pred_fallthru
          _
      $region12: #{tpu_custom_call.1} parent=5 // pred_fallthru
        _
      %p127 = scmp.lt.s32.totalorder %s12, 2
      // Predicated region
      $region21: #{tpu_custom_call.1} parent=5 // pred_check
        %p128 = pneg %p127
      $region22: #{tpu_custom_call.1} parent=5 // pred_check_branch
        %130 = sbr.rel (%p128) target = $region24
      $region23: #{tpu_custom_call.1} parent=5 // pred_region
        // Predicated region
        $region25: #{tpu_custom_call.1} parent=23 // pred_check
          %p131 = pneg %p32
        $region26: #{tpu_custom_call.1} parent=23 // pred_check_branch
          %133 = sbr.rel (%p131) target = $region28
        $region27: #{tpu_custom_call.1} parent=23 // pred_region
          %s134 = sand.u32 %s22, 1
          %s135 = scalar_lea.sflag [#allocation3], %s134
          %s136 = sand.u32 %s22, 1
          %s137 = smul.addr %s136, 896
          %s138 = scalar_lea.vmem [#allocation2], %s137
          %s139 = smul.u32 16, %s12
          %s140 = ssub.s32 17, %s139
          %p141 = scmp.lt.s32.totalorder %s140, 16
          %s142 = scalar_select %p141, %s140, 16
          %s143 = smul.u32 128, %s142
          %s144 = smul.u32 %s143, 7
          %s146 = ssub.s32 14336, %s144
          %147 = vsyncadd %s135, %s146
          %p148 = scmp.ne.s32.totalorder 0, %s144
          %s149 = smul.addr %s139, 7
          %s150 = smul.addr %s149, 128
          %s151 = scalar_lea.hbm %s0, %s150
          %s152 = smul.u32 56, %s142
          %s153 = sshll.u32 %s138, 4
          %s154 = int_to_ptr.vmem [resolvable:$true] %s153
          %s155 = sshll.u32 %s152, 4
          %159 = dma.hbm_to_vmem [thread:$0]  (%p148), %s151, %s155, %s154, %s135, 896, 896, 56
        $region28: #{tpu_custom_call.1} parent=23 // pred_fallthru
          _
      $region24: #{tpu_custom_call.1} parent=5 // pred_fallthru
        _
      %p160 = scmp.le.s32.totalorder 1, %s12
      %p161 = scmp.lt.s32.totalorder %s12, 3
      %p162 = pnand %p160, %p161
      %p163 = pneg %p162
      // Predicated region
      $region29: #{tpu_custom_call.1} parent=5 // pred_check
        _
      $region30: #{tpu_custom_call.1} parent=5 // pred_check_branch
        %165 = sbr.rel (%p162) target = $region32
      $region31: #{tpu_custom_call.1} parent=5 // pred_region
        %s166 = ssub.s32 %s12, 1
        %s167 = sand.u32 %s25, 1
        %s168 = scalar_lea.sflag [#allocation3], %s167
        %s169 = sand.u32 %s25, 1
        %s170 = smul.addr %s169, 896
        %s171 = scalar_lea.vmem [#allocation2], %s170
        // Predicated region
        $region33: #{tpu_custom_call.1} parent=31 // pred_check
          %p172 = pneg %p38
        $region34: #{tpu_custom_call.1} parent=31 // pred_check_branch
          %174 = sbr.rel (%p172) target = $region36
        $region35: #{tpu_custom_call.1} parent=31 // pred_region
          %175 = dma.done %s168, 14336
        $region36: #{tpu_custom_call.1} parent=31 // pred_fallthru
          _
        %s176 = sand.u32 %s25, 1
        %s177 = scalar_lea.sflag [#allocation3], %s176
        %s178 = sand.u32 %s25, 1
        %s179 = smul.addr %s178, 896
        %s180 = scalar_lea.vmem [#allocation2], %s179
        %p181 = pneg %p38
        %p182 = pneg %p35
        %p183 = pneg %p59
        %p184 = pneg %p56
        %p185 = pneg %p80
        %p186 = pneg %p77
        %p187 = pneg %p106
        %p188 = pneg %p103
        %s189 = sand.u32 %s93, 1
        %s190 = sand.u32 %s93, 1
        %s191 = smul.addr %s190, 128
        %s192 = scalar_lea.vmem [#allocation4], %s191
        %s193 = smul.u32 16, %s17
        %s194 = ssub.s32 17, %s193
        %p195 = scmp.lt.s32.totalorder %s194, 16
        %s196 = scalar_select %p195, %s194, 16
        %s197 = smul.u32 128, %s196
        %s198 = smul.u32 %s197, 7
        %s199 = smul.u32 16, %s17
        %s200 = ssub.s32 17, %s199
        %p201 = scmp.lt.s32.totalorder %s200, 16
        %s202 = scalar_select %p201, %s200, 16
        %s203 = smul.u32 128, %s202
        %v204 = vld [vmem:[%s171] sm:$0xff]
        %v205 = vld [vmem:[%s171 + $0x8] sm:$0xff]
        %v206 = vld [vmem:[%s171 + $0x10] sm:$0xff]
        %v207 = vld [vmem:[%s171 + $0x18] sm:$0xff]
        %v208 = vld [vmem:[%s171 + $0x20] sm:$0xff]
        %v209 = vld [vmem:[%s171 + $0x28] sm:$0xff]
        %v210 = vld [vmem:[%s171 + $0x30] sm:$0xff]
        %v211 = vld [vmem:[%s171 + $0x38] sm:$0xff]
        %v212 = vld [vmem:[%s171 + $0x40] sm:$0xff]
        %v213 = vld [vmem:[%s171 + $0x48] sm:$0xff]
        %v214 = vld [vmem:[%s171 + $0x50] sm:$0xff]
        %v215 = vld [vmem:[%s171 + $0x58] sm:$0xff]
        %v216 = vld [vmem:[%s171 + $0x60] sm:$0xff]
        %v217 = vld [vmem:[%s171 + $0x68] sm:$0xff]
        %v218 = vld [vmem:[%s171 + $0x70] sm:$0xff]
        %v219 = vld [vmem:[%s171 + $0x78] sm:$0xff]
        %v220 = vld [vmem:[%s171 + $0x80] sm:$0xff]
        %v221 = vld [vmem:[%s171 + $0x88] sm:$0xff]
        %v222 = vld [vmem:[%s171 + $0x90] sm:$0xff]
        %v223 = vld [vmem:[%s171 + $0x98] sm:$0xff]
        %v224 = vld [vmem:[%s171 + $0xa0] sm:$0xff]
        %v225 = vld [vmem:[%s171 + $0xa8] sm:$0xff]
        %v226 = vld [vmem:[%s171 + $0xb0] sm:$0xff]
        %v227 = vld [vmem:[%s171 + $0xb8] sm:$0xff]
        %v228 = vld [vmem:[%s171 + $0xc0] sm:$0xff]
        %v229 = vld [vmem:[%s171 + $0xc8] sm:$0xff]
        %v230 = vld [vmem:[%s171 + $0xd0] sm:$0xff]
        %v231 = vld [vmem:[%s171 + $0xd8] sm:$0xff]
        %v232 = vld [vmem:[%s171 + $0xe0] sm:$0xff]
        %v233 = vld [vmem:[%s171 + $0xe8] sm:$0xff]
        %v234 = vld [vmem:[%s171 + $0xf0] sm:$0xff]
        %v235 = vld [vmem:[%s171 + $0xf8] sm:$0xff]
        %v236 = vld [vmem:[%s171 + $0x100] sm:$0xff]
        %v237 = vld [vmem:[%s171 + $0x108] sm:$0xff]
        %v238 = vld [vmem:[%s171 + $0x110] sm:$0xff]
        %v239 = vld [vmem:[%s171 + $0x118] sm:$0xff]
        %v240 = vld [vmem:[%s171 + $0x120] sm:$0xff]
        %v241 = vld [vmem:[%s171 + $0x128] sm:$0xff]
        %v242 = vld [vmem:[%s171 + $0x130] sm:$0xff]
        %v243 = vld [vmem:[%s171 + $0x138] sm:$0xff]
        %v244 = vld [vmem:[%s171 + $0x140] sm:$0xff]
        %v245 = vld [vmem:[%s171 + $0x148] sm:$0xff]
        %v246 = vld [vmem:[%s171 + $0x150] sm:$0xff]
        %v247 = vld [vmem:[%s171 + $0x158] sm:$0xff]
        %v248 = vld [vmem:[%s171 + $0x160] sm:$0xff]
        %v249 = vld [vmem:[%s171 + $0x168] sm:$0xff]
        %v250 = vld [vmem:[%s171 + $0x170] sm:$0xff]
        %v251 = vld [vmem:[%s171 + $0x178] sm:$0xff]
        %v252 = vld [vmem:[%s171 + $0x180] sm:$0xff]
        %v253 = vld [vmem:[%s171 + $0x188] sm:$0xff]
        %v254 = vld [vmem:[%s171 + $0x190] sm:$0xff]
        %v255 = vld [vmem:[%s171 + $0x198] sm:$0xff]
        %v256 = vld [vmem:[%s171 + $0x1a0] sm:$0xff]
        %v257 = vld [vmem:[%s171 + $0x1a8] sm:$0xff]
        %v258 = vld [vmem:[%s171 + $0x1b0] sm:$0xff]
        %v259 = vld [vmem:[%s171 + $0x1b8] sm:$0xff]
        %v260 = vld [vmem:[%s171 + $0x1c0] sm:$0xff]
        %v261 = vld [vmem:[%s171 + $0x1c8] sm:$0xff]
        %v262 = vld [vmem:[%s171 + $0x1d0] sm:$0xff]
        %v263 = vld [vmem:[%s171 + $0x1d8] sm:$0xff]
        %v264 = vld [vmem:[%s171 + $0x1e0] sm:$0xff]
        %v265 = vld [vmem:[%s171 + $0x1e8] sm:$0xff]
        %v266 = vld [vmem:[%s171 + $0x1f0] sm:$0xff]
        %v267 = vld [vmem:[%s171 + $0x1f8] sm:$0xff]
        %v268 = vld [vmem:[%s171 + $0x200] sm:$0xff]
        %v269 = vld [vmem:[%s171 + $0x208] sm:$0xff]
        %v270 = vld [vmem:[%s171 + $0x210] sm:$0xff]
        %v271 = vld [vmem:[%s171 + $0x218] sm:$0xff]
        %v272 = vld [vmem:[%s171 + $0x220] sm:$0xff]
        %v273 = vld [vmem:[%s171 + $0x228] sm:$0xff]
        %v274 = vld [vmem:[%s171 + $0x230] sm:$0xff]
        %v275 = vld [vmem:[%s171 + $0x238] sm:$0xff]
        %v276 = vld [vmem:[%s171 + $0x240] sm:$0xff]
        %v277 = vld [vmem:[%s171 + $0x248] sm:$0xff]
        %v278 = vld [vmem:[%s171 + $0x250] sm:$0xff]
        %v279 = vld [vmem:[%s171 + $0x258] sm:$0xff]
        %v280 = vld [vmem:[%s171 + $0x260] sm:$0xff]
        %v281 = vld [vmem:[%s171 + $0x268] sm:$0xff]
        %v282 = vld [vmem:[%s171 + $0x270] sm:$0xff]
        %v283 = vld [vmem:[%s171 + $0x278] sm:$0xff]
        %v284 = vld [vmem:[%s171 + $0x280] sm:$0xff]
        %v285 = vld [vmem:[%s171 + $0x288] sm:$0xff]
        %v286 = vld [vmem:[%s171 + $0x290] sm:$0xff]
        %v287 = vld [vmem:[%s171 + $0x298] sm:$0xff]
        %v288 = vld [vmem:[%s171 + $0x2a0] sm:$0xff]
        %v289 = vld [vmem:[%s171 + $0x2a8] sm:$0xff]
        %v290 = vld [vmem:[%s171 + $0x2b0] sm:$0xff]
        %v291 = vld [vmem:[%s171 + $0x2b8] sm:$0xff]
        %v292 = vld [vmem:[%s171 + $0x2c0] sm:$0xff]
        %v293 = vld [vmem:[%s171 + $0x2c8] sm:$0xff]
        %v294 = vld [vmem:[%s171 + $0x2d0] sm:$0xff]
        %v295 = vld [vmem:[%s171 + $0x2d8] sm:$0xff]
        %v296 = vld [vmem:[%s171 + $0x2e0] sm:$0xff]
        %v297 = vld [vmem:[%s171 + $0x2e8] sm:$0xff]
        %v298 = vld [vmem:[%s171 + $0x2f0] sm:$0xff]
        %v299 = vld [vmem:[%s171 + $0x2f8] sm:$0xff]
        %v300 = vld [vmem:[%s171 + $0x300] sm:$0xff]
        %v301 = vld [vmem:[%s171 + $0x308] sm:$0xff]
        %v302 = vld [vmem:[%s171 + $0x310] sm:$0xff]
        %v303 = vld [vmem:[%s171 + $0x318] sm:$0xff]
        %v304 = vld [vmem:[%s171 + $0x320] sm:$0xff]
        %v305 = vld [vmem:[%s171 + $0x328] sm:$0xff]
        %v306 = vld [vmem:[%s171 + $0x330] sm:$0xff]
        %v307 = vld [vmem:[%s171 + $0x338] sm:$0xff]
        %v308 = vld [vmem:[%s171 + $0x340] sm:$0xff]
        %v309 = vld [vmem:[%s171 + $0x348] sm:$0xff]
        %v310 = vld [vmem:[%s171 + $0x350] sm:$0xff]
        %v311 = vld [vmem:[%s171 + $0x358] sm:$0xff]
        %v312 = vld [vmem:[%s171 + $0x360] sm:$0xff]
        %v313 = vld [vmem:[%s171 + $0x368] sm:$0xff]
        %v314 = vld [vmem:[%s171 + $0x370] sm:$0xff]
        %v315 = vld [vmem:[%s171 + $0x378] sm:$0xff]
        %v316 = vld [vmem:[%s1] sm:$0xff]
        %v317 = vld [vmem:[%s1 + $0x8] sm:$0xff]
        %v318 = vld [vmem:[%s1 + $0x10] sm:$0xff]
        %v319 = vld [vmem:[%s1 + $0x18] sm:$0xff]
        %v320 = vld [vmem:[%s1 + $0x20] sm:$0xff]
        %v321 = vld [vmem:[%s1 + $0x28] sm:$0xff]
        %v322 = vld [vmem:[%s1 + $0x30] sm:$0xff]
        %v323 = vld [vmem:[%s1 + $0x38] sm:$0xff]
        %v324 = vld [vmem:[%s1 + $0x40] sm:$0xff]
        %v325 = vld [vmem:[%s1 + $0x48] sm:$0xff]
        %v326 = vld [vmem:[%s1 + $0x50] sm:$0xff]
        %v327 = vld [vmem:[%s1 + $0x58] sm:$0xff]
        %v328 = vld [vmem:[%s1 + $0x60] sm:$0xff]
        %v329 = vld [vmem:[%s1 + $0x68] sm:$0xff]
        %v330 = vld [vmem:[%s1 + $0x70] sm:$0xff]
        %v331 = vld [vmem:[%s1 + $0x78] sm:$0xff]
        %v332 = vld [vmem:[%s1 + $0x80] sm:$0xff]
        %v333 = vld [vmem:[%s1 + $0x88] sm:$0xff]
        %v334 = vld [vmem:[%s1 + $0x90] sm:$0xff]
        %v335 = vld [vmem:[%s1 + $0x98] sm:$0xff]
        %v336 = vld [vmem:[%s1 + $0xa0] sm:$0xff]
        %v337 = vld [vmem:[%s1 + $0xa8] sm:$0xff]
        %v338 = vld [vmem:[%s1 + $0xb0] sm:$0xff]
        %v339 = vld [vmem:[%s1 + $0xb8] sm:$0xff]
        %v340 = vld [vmem:[%s1 + $0xc0] sm:$0xff]
        %v341 = vld [vmem:[%s1 + $0xc8] sm:$0xff]
        %v342 = vld [vmem:[%s1 + $0xd0] sm:$0xff]
        %v343 = vld [vmem:[%s1 + $0xd8] sm:$0xff]
        %v344 = vld [vmem:[%s1 + $0xe0] sm:$0xff]
        %v345 = vld [vmem:[%s1 + $0xe8] sm:$0xff]
        %v346 = vld [vmem:[%s1 + $0xf0] sm:$0xff]
        %v347 = vld [vmem:[%s1 + $0xf8] sm:$0xff]
        %v348 = vld [vmem:[%s1 + $0x100] sm:$0xff]
        %v349 = vld [vmem:[%s1 + $0x108] sm:$0xff]
        %v350 = vld [vmem:[%s1 + $0x110] sm:$0xff]
        %v351 = vld [vmem:[%s1 + $0x118] sm:$0xff]
        %v352 = vld [vmem:[%s1 + $0x120] sm:$0xff]
        %v353 = vld [vmem:[%s1 + $0x128] sm:$0xff]
        %v354 = vld [vmem:[%s1 + $0x130] sm:$0xff]
        %v355 = vld [vmem:[%s1 + $0x138] sm:$0xff]
        %v356 = vld [vmem:[%s1 + $0x140] sm:$0xff]
        %v357 = vld [vmem:[%s1 + $0x148] sm:$0xff]
        %v358 = vld [vmem:[%s1 + $0x150] sm:$0xff]
        %v359 = vld [vmem:[%s1 + $0x158] sm:$0xff]
        %v360 = vld [vmem:[%s1 + $0x160] sm:$0xff]
        %v361 = vld [vmem:[%s1 + $0x168] sm:$0xff]
        %v362 = vld [vmem:[%s1 + $0x170] sm:$0xff]
        %v363 = vld [vmem:[%s1 + $0x178] sm:$0xff]
        %v364 = vld [vmem:[%s1 + $0x180] sm:$0xff]
        %v365 = vld [vmem:[%s1 + $0x188] sm:$0xff]
        %v366 = vld [vmem:[%s1 + $0x190] sm:$0xff]
        %v367 = vld [vmem:[%s1 + $0x198] sm:$0xff]
        %v368 = vld [vmem:[%s1 + $0x1a0] sm:$0xff]
        %v369 = vld [vmem:[%s1 + $0x1a8] sm:$0xff]
        %v370 = vld [vmem:[%s1 + $0x1b0] sm:$0xff]
        %v371 = vld [vmem:[%s1 + $0x1b8] sm:$0xff]
        %v372 = vld [vmem:[%s1 + $0x1c0] sm:$0xff]
        %v373 = vld [vmem:[%s1 + $0x1c8] sm:$0xff]
        %v374 = vld [vmem:[%s1 + $0x1d0] sm:$0xff]
        %v375 = vld [vmem:[%s1 + $0x1d8] sm:$0xff]
        %v376 = vld [vmem:[%s1 + $0x1e0] sm:$0xff]
        %v377 = vld [vmem:[%s1 + $0x1e8] sm:$0xff]
        %v378 = vld [vmem:[%s1 + $0x1f0] sm:$0xff]
        %v379 = vld [vmem:[%s1 + $0x1f8] sm:$0xff]
        %v380 = vld [vmem:[%s1 + $0x200] sm:$0xff]
        %v381 = vld [vmem:[%s1 + $0x208] sm:$0xff]
        %v382 = vld [vmem:[%s1 + $0x210] sm:$0xff]
        %v383 = vld [vmem:[%s1 + $0x218] sm:$0xff]
        %v384 = vld [vmem:[%s1 + $0x220] sm:$0xff]
        %v385 = vld [vmem:[%s1 + $0x228] sm:$0xff]
        %v386 = vld [vmem:[%s1 + $0x230] sm:$0xff]
        %v387 = vld [vmem:[%s1 + $0x238] sm:$0xff]
        %v388 = vld [vmem:[%s1 + $0x240] sm:$0xff]
        %v389 = vld [vmem:[%s1 + $0x248] sm:$0xff]
        %v390 = vld [vmem:[%s1 + $0x250] sm:$0xff]
        %v391 = vld [vmem:[%s1 + $0x258] sm:$0xff]
        %v392 = vld [vmem:[%s1 + $0x260] sm:$0xff]
        %v393 = vld [vmem:[%s1 + $0x268] sm:$0xff]
        %v394 = vld [vmem:[%s1 + $0x270] sm:$0xff]
        %v395 = vld [vmem:[%s1 + $0x278] sm:$0xff]
        %v396 = vld [vmem:[%s1 + $0x280] sm:$0xff]
        %v397 = vld [vmem:[%s1 + $0x288] sm:$0xff]
        %v398 = vld [vmem:[%s1 + $0x290] sm:$0xff]
        %v399 = vld [vmem:[%s1 + $0x298] sm:$0xff]
        %v400 = vld [vmem:[%s1 + $0x2a0] sm:$0xff]
        %v401 = vld [vmem:[%s1 + $0x2a8] sm:$0xff]
        %v402 = vld [vmem:[%s1 + $0x2b0] sm:$0xff]
        %v403 = vld [vmem:[%s1 + $0x2b8] sm:$0xff]
        %v404 = vld [vmem:[%s1 + $0x2c0] sm:$0xff]
        %v405 = vld [vmem:[%s1 + $0x2c8] sm:$0xff]
        %v406 = vld [vmem:[%s1 + $0x2d0] sm:$0xff]
        %v407 = vld [vmem:[%s1 + $0x2d8] sm:$0xff]
        %v408 = vld [vmem:[%s1 + $0x2e0] sm:$0xff]
        %v409 = vld [vmem:[%s1 + $0x2e8] sm:$0xff]
        %v410 = vld [vmem:[%s1 + $0x2f0] sm:$0xff]
        %v411 = vld [vmem:[%s1 + $0x2f8] sm:$0xff]
        %v412 = vld [vmem:[%s1 + $0x300] sm:$0xff]
        %v413 = vld [vmem:[%s1 + $0x308] sm:$0xff]
        %v414 = vld [vmem:[%s2] sm:$0x1]
        %v416 = vlaneseq
        %v417 = vshrl.u32 %v416, 7
        %v418 = vsub.s32 0, %v417
        %v419 = vrot.slane %v414, %v418
        %vm421 = vcmask 130048
        %v423 = vsel %vm421, %v210, 0
        %v426 = vsel %vm421, %v217, 0
        %v429 = vsel %vm421, %v224, 0
        %v432 = vsel %vm421, %v231, 0
        %v435 = vsel %vm421, %v238, 0
        %v438 = vsel %vm421, %v245, 0
        %v441 = vsel %vm421, %v252, 0
        %v444 = vsel %vm421, %v259, 0
        %v447 = vsel %vm421, %v266, 0
        %v450 = vsel %vm421, %v273, 0
        %v453 = vsel %vm421, %v280, 0
        %v456 = vsel %vm421, %v287, 0
        %v459 = vsel %vm421, %v294, 0
        %v462 = vsel %vm421, %v301, 0
        %v465 = vsel %vm421, %v308, 0
        %v468 = vsel %vm421, %v315, 0
        %470 = vmatprep.subr.mxu0 0.0
        %471 = vmatpush1.msra.mxu0 %v331
        %472 = vmatprep.subr.mxu0 0.0
        %473 = vmatpush1.msra.mxu0 %v330
        %474 = vmatprep.subr.mxu0 0.0
        %475 = vmatpush1.msra.mxu0 %v329
        %476 = vmatprep.subr.mxu0 0.0
        %477 = vmatpush1.msra.mxu0 %v328
        %478 = vmatprep.subr.mxu0 0.0
        %479 = vmatpush1.msra.mxu0 %v327
        %480 = vmatprep.subr.mxu0 0.0
        %481 = vmatpush1.msra.mxu0 %v326
        %482 = vmatprep.subr.mxu0 0.0
        %483 = vmatpush1.msra.mxu0 %v325
        %484 = vmatprep.subr.mxu0 0.0
        %485 = vmatpush1.msra.mxu0 %v324
        %486 = vmatprep.subr.mxu0 0.0
        %487 = vmatpush1.msra.mxu0 %v323
        %488 = vmatprep.subr.mxu0 0.0
        %489 = vmatpush1.msra.mxu0 %v322
        %490 = vmatprep.subr.mxu0 0.0
        %491 = vmatpush1.msra.mxu0 %v321
        %492 = vmatprep.subr.mxu0 0.0
        %493 = vmatpush1.msra.mxu0 %v320
        %494 = vmatprep.subr.mxu0 0.0
        %495 = vmatpush1.msra.mxu0 %v319
        %496 = vmatprep.subr.mxu0 0.0
        %497 = vmatpush1.msra.mxu0 %v318
        %498 = vmatprep.subr.mxu0 0.0
        %499 = vmatpush1.msra.mxu0 %v317
        %500 = vmatprep.subr.mxu0 0.0
        %501 = vmatpush1.msra.mxu0 %v316
        %502 = vmatprep.subr.mxu0 0.0
        %503 = vmatpush2.msra.mxu0 %v347
        %504 = vmatprep.subr.mxu0 0.0
        %505 = vmatpush2.msra.mxu0 %v346
        %506 = vmatprep.subr.mxu0 0.0
        %507 = vmatpush2.msra.mxu0 %v345
        %508 = vmatprep.subr.mxu0 0.0
        %509 = vmatpush2.msra.mxu0 %v344
        %510 = vmatprep.subr.mxu0 0.0
        %511 = vmatpush2.msra.mxu0 %v343
        %512 = vmatprep.subr.mxu0 0.0
        %513 = vmatpush2.msra.mxu0 %v342
        %514 = vmatprep.subr.mxu0 0.0
        %515 = vmatpush2.msra.mxu0 %v341
        %516 = vmatprep.subr.mxu0 0.0
        %517 = vmatpush2.msra.mxu0 %v340
        %518 = vmatprep.subr.mxu0 0.0
        %519 = vmatpush2.msra.mxu0 %v339
        %520 = vmatprep.subr.mxu0 0.0
        %521 = vmatpush2.msra.mxu0 %v338
        %522 = vmatprep.subr.mxu0 0.0
        %523 = vmatpush2.msra.mxu0 %v337
        %524 = vmatprep.subr.mxu0 0.0
        %525 = vmatpush2.msra.mxu0 %v336
        %526 = vmatprep.subr.mxu0 0.0
        %527 = vmatpush2.msra.mxu0 %v335
        %528 = vmatprep.subr.mxu0 0.0
        %529 = vmatpush2.msra.mxu0 %v334
        %530 = vmatprep.subr.mxu0 0.0
        %531 = vmatpush2.msra.mxu0 %v333
        %532 = vmatprep.subr.mxu0 0.0
        %533 = vmatpush2.msra.mxu0 %v332
        %534 = vmatprep.mubr.f32.mxu0 %v205
        %535 = vmatmul.mubr.f32.gmra.mxu0 %v204
        %v536 = vpop.f32.mrf.mxu0
        %v537 = vadd.f32 %v419, %v536
        %v538 = vpop.f32.mrf.mxu0
        %539 = vmatprep.mubr.f32.mxu0 %v212
        %540 = vmatmul.mubr.f32.gmra.mxu0 %v211
        %v541 = vpop.f32.mrf.mxu0
        %v542 = vadd.f32 %v419, %v541
        %v543 = vpop.f32.mrf.mxu0
        %544 = vmatprep.mubr.f32.mxu0 %v219
        %545 = vmatmul.mubr.f32.gmra.mxu0 %v218
        %v546 = vpop.f32.mrf.mxu0
        %v547 = vadd.f32 %v419, %v546
        %v548 = vpop.f32.mrf.mxu0
        %549 = vmatprep.mubr.f32.mxu0 %v226
        %550 = vmatmul.mubr.f32.gmra.mxu0 %v225
        %v551 = vpop.f32.mrf.mxu0
        %v552 = vadd.f32 %v419, %v551
        %v553 = vpop.f32.mrf.mxu0
        %554 = vmatprep.mubr.f32.mxu0 %v233
        %555 = vmatmul.mubr.f32.gmra.mxu0 %v232
        %v556 = vpop.f32.mrf.mxu0
        %v557 = vadd.f32 %v419, %v556
        %v558 = vpop.f32.mrf.mxu0
        %559 = vmatprep.mubr.f32.mxu0 %v240
        %560 = vmatmul.mubr.f32.gmra.mxu0 %v239
        %v561 = vpop.f32.mrf.mxu0
        %v562 = vadd.f32 %v419, %v561
        %v563 = vpop.f32.mrf.mxu0
        %564 = vmatprep.mubr.f32.mxu0 %v247
        %565 = vmatmul.mubr.f32.gmra.mxu0 %v246
        %v566 = vpop.f32.mrf.mxu0
        %v567 = vadd.f32 %v419, %v566
        %v568 = vpop.f32.mrf.mxu0
        %569 = vmatprep.mubr.f32.mxu0 %v254
        %570 = vmatmul.mubr.f32.gmra.mxu0 %v253
        %v571 = vpop.f32.mrf.mxu0
        %v572 = vadd.f32 %v419, %v571
        %v573 = vpop.f32.mrf.mxu0
        %574 = vmatprep.mubr.f32.mxu0 %v261
        %575 = vmatmul.mubr.f32.gmra.mxu0 %v260
        %v576 = vpop.f32.mrf.mxu0
        %v577 = vadd.f32 %v419, %v576
        %v578 = vpop.f32.mrf.mxu0
        %579 = vmatprep.mubr.f32.mxu0 %v268
        %580 = vmatmul.mubr.f32.gmra.mxu0 %v267
        %v581 = vpop.f32.mrf.mxu0
        %v582 = vadd.f32 %v419, %v581
        %v583 = vpop.f32.mrf.mxu0
        %584 = vmatprep.mubr.f32.mxu0 %v275
        %585 = vmatmul.mubr.f32.gmra.mxu0 %v274
        %v586 = vpop.f32.mrf.mxu0
        %v587 = vadd.f32 %v419, %v586
        %v588 = vpop.f32.mrf.mxu0
        %589 = vmatprep.mubr.f32.mxu0 %v282
        %590 = vmatmul.mubr.f32.gmra.mxu0 %v281
        %v591 = vpop.f32.mrf.mxu0
        %v592 = vadd.f32 %v419, %v591
        %v593 = vpop.f32.mrf.mxu0
        %594 = vmatprep.mubr.f32.mxu0 %v289
        %595 = vmatmul.mubr.f32.gmra.mxu0 %v288
        %v596 = vpop.f32.mrf.mxu0
        %v597 = vadd.f32 %v419, %v596
        %v598 = vpop.f32.mrf.mxu0
        %599 = vmatprep.mubr.f32.mxu0 %v296
        %600 = vmatmul.mubr.f32.gmra.mxu0 %v295
        %v601 = vpop.f32.mrf.mxu0
        %v602 = vadd.f32 %v419, %v601
        %v603 = vpop.f32.mrf.mxu0
        %604 = vmatprep.mubr.f32.mxu0 %v303
        %605 = vmatmul.mubr.f32.gmra.mxu0 %v302
        %v606 = vpop.f32.mrf.mxu0
        %v607 = vadd.f32 %v419, %v606
        %v608 = vpop.f32.mrf.mxu0
        %609 = vmatprep.mubr.f32.mxu0 %v310
        %610 = vmatmul.mubr.f32.gmra.mxu0 %v309
        %v611 = vpop.f32.mrf.mxu0
        %v612 = vadd.f32 %v419, %v611
        %v613 = vpop.f32.mrf.mxu0
        %614 = vdwg.mxu0
        %615 = vmatprep.subr.mxu0 0.0
        %616 = vmatpush1.msra.mxu0 %v363
        %617 = vmatprep.subr.mxu0 0.0
        %618 = vmatpush1.msra.mxu0 %v362
        %619 = vmatprep.subr.mxu0 0.0
        %620 = vmatpush1.msra.mxu0 %v361
        %621 = vmatprep.subr.mxu0 0.0
        %622 = vmatpush1.msra.mxu0 %v360
        %623 = vmatprep.subr.mxu0 0.0
        %624 = vmatpush1.msra.mxu0 %v359
        %625 = vmatprep.subr.mxu0 0.0
        %626 = vmatpush1.msra.mxu0 %v358
        %627 = vmatprep.subr.mxu0 0.0
        %628 = vmatpush1.msra.mxu0 %v357
        %629 = vmatprep.subr.mxu0 0.0
        %630 = vmatpush1.msra.mxu0 %v356
        %631 = vmatprep.subr.mxu0 0.0
        %632 = vmatpush1.msra.mxu0 %v355
        %633 = vmatprep.subr.mxu0 0.0
        %634 = vmatpush1.msra.mxu0 %v354
        %635 = vmatprep.subr.mxu0 0.0
        %636 = vmatpush1.msra.mxu0 %v353
        %637 = vmatprep.subr.mxu0 0.0
        %638 = vmatpush1.msra.mxu0 %v352
        %639 = vmatprep.subr.mxu0 0.0
        %640 = vmatpush1.msra.mxu0 %v351
        %641 = vmatprep.subr.mxu0 0.0
        %642 = vmatpush1.msra.mxu0 %v350
        %643 = vmatprep.subr.mxu0 0.0
        %644 = vmatpush1.msra.mxu0 %v349
        %645 = vmatprep.subr.mxu0 0.0
        %646 = vmatpush1.msra.mxu0 %v348
        %647 = vmatprep.subr.mxu0 0.0
        %648 = vmatpush2.msra.mxu0 %v379
        %649 = vmatprep.subr.mxu0 0.0
        %650 = vmatpush2.msra.mxu0 %v378
        %651 = vmatprep.subr.mxu0 0.0
        %652 = vmatpush2.msra.mxu0 %v377
        %653 = vmatprep.subr.mxu0 0.0
        %654 = vmatpush2.msra.mxu0 %v376
        %655 = vmatprep.subr.mxu0 0.0
        %656 = vmatpush2.msra.mxu0 %v375
        %657 = vmatprep.subr.mxu0 0.0
        %658 = vmatpush2.msra.mxu0 %v374
        %659 = vmatprep.subr.mxu0 0.0
        %660 = vmatpush2.msra.mxu0 %v373
        %661 = vmatprep.subr.mxu0 0.0
        %662 = vmatpush2.msra.mxu0 %v372
        %663 = vmatprep.subr.mxu0 0.0
        %664 = vmatpush2.msra.mxu0 %v371
        %665 = vmatprep.subr.mxu0 0.0
        %666 = vmatpush2.msra.mxu0 %v370
        %667 = vmatprep.subr.mxu0 0.0
        %668 = vmatpush2.msra.mxu0 %v369
        %669 = vmatprep.subr.mxu0 0.0
        %670 = vmatpush2.msra.mxu0 %v368
        %671 = vmatprep.subr.mxu0 0.0
        %672 = vmatpush2.msra.mxu0 %v367
        %673 = vmatprep.subr.mxu0 0.0
        %674 = vmatpush2.msra.mxu0 %v366
        %675 = vmatprep.subr.mxu0 0.0
        %676 = vmatpush2.msra.mxu0 %v365
        %677 = vmatprep.subr.mxu0 0.0
        %678 = vmatpush2.msra.mxu0 %v364
        %679 = vmatprep.mubr.f32.mxu0 %v207
        %680 = vmatmul.mubr.f32.gmra.mxu0 %v206
        %v681 = vpop.f32.mrf.mxu0
        %v682 = vadd.f32 %v537, %v681
        %v683 = vpop.f32.mrf.mxu0
        %684 = vmatprep.mubr.f32.mxu0 %v214
        %685 = vmatmul.mubr.f32.gmra.mxu0 %v213
        %v686 = vpop.f32.mrf.mxu0
        %v687 = vadd.f32 %v542, %v686
        %v688 = vpop.f32.mrf.mxu0
        %689 = vmatprep.mubr.f32.mxu0 %v221
        %690 = vmatmul.mubr.f32.gmra.mxu0 %v220
        %v691 = vpop.f32.mrf.mxu0
        %v692 = vadd.f32 %v547, %v691
        %v693 = vpop.f32.mrf.mxu0
        %694 = vmatprep.mubr.f32.mxu0 %v228
        %695 = vmatmul.mubr.f32.gmra.mxu0 %v227
        %v696 = vpop.f32.mrf.mxu0
        %v697 = vadd.f32 %v552, %v696
        %v698 = vpop.f32.mrf.mxu0
        %699 = vmatprep.mubr.f32.mxu0 %v235
        %700 = vmatmul.mubr.f32.gmra.mxu0 %v234
        %v701 = vpop.f32.mrf.mxu0
        %v702 = vadd.f32 %v557, %v701
        %v703 = vpop.f32.mrf.mxu0
        %704 = vmatprep.mubr.f32.mxu0 %v242
        %705 = vmatmul.mubr.f32.gmra.mxu0 %v241
        %v706 = vpop.f32.mrf.mxu0
        %v707 = vadd.f32 %v562, %v706
        %v708 = vpop.f32.mrf.mxu0
        %709 = vmatprep.mubr.f32.mxu0 %v249
        %710 = vmatmul.mubr.f32.gmra.mxu0 %v248
        %v711 = vpop.f32.mrf.mxu0
        %v712 = vadd.f32 %v567, %v711
        %v713 = vpop.f32.mrf.mxu0
        %714 = vmatprep.mubr.f32.mxu0 %v256
        %715 = vmatmul.mubr.f32.gmra.mxu0 %v255
        %v716 = vpop.f32.mrf.mxu0
        %v717 = vadd.f32 %v572, %v716
        %v718 = vpop.f32.mrf.mxu0
        %719 = vmatprep.mubr.f32.mxu0 %v263
        %720 = vmatmul.mubr.f32.gmra.mxu0 %v262
        %v721 = vpop.f32.mrf.mxu0
        %v722 = vadd.f32 %v577, %v721
        %v723 = vpop.f32.mrf.mxu0
        %724 = vmatprep.mubr.f32.mxu0 %v270
        %725 = vmatmul.mubr.f32.gmra.mxu0 %v269
        %v726 = vpop.f32.mrf.mxu0
        %v727 = vadd.f32 %v582, %v726
        %v728 = vpop.f32.mrf.mxu0
        %729 = vmatprep.mubr.f32.mxu0 %v277
        %730 = vmatmul.mubr.f32.gmra.mxu0 %v276
        %v731 = vpop.f32.mrf.mxu0
        %v732 = vadd.f32 %v587, %v731
        %v733 = vpop.f32.mrf.mxu0
        %734 = vmatprep.mubr.f32.mxu0 %v284
        %735 = vmatmul.mubr.f32.gmra.mxu0 %v283
        %v736 = vpop.f32.mrf.mxu0
        %v737 = vadd.f32 %v592, %v736
        %v738 = vpop.f32.mrf.mxu0
        %739 = vmatprep.mubr.f32.mxu0 %v291
        %740 = vmatmul.mubr.f32.gmra.mxu0 %v290
        %v741 = vpop.f32.mrf.mxu0
        %v742 = vadd.f32 %v597, %v741
        %v743 = vpop.f32.mrf.mxu0
        %744 = vmatprep.mubr.f32.mxu0 %v298
        %745 = vmatmul.mubr.f32.gmra.mxu0 %v297
        %v746 = vpop.f32.mrf.mxu0
        %v747 = vadd.f32 %v602, %v746
        %v748 = vpop.f32.mrf.mxu0
        %749 = vmatprep.mubr.f32.mxu0 %v305
        %750 = vmatmul.mubr.f32.gmra.mxu0 %v304
        %v751 = vpop.f32.mrf.mxu0
        %v752 = vadd.f32 %v607, %v751
        %v753 = vpop.f32.mrf.mxu0
        %754 = vmatprep.mubr.f32.mxu0 %v312
        %755 = vmatmul.mubr.f32.gmra.mxu0 %v311
        %v756 = vpop.f32.mrf.mxu0
        %v757 = vadd.f32 %v612, %v756
        %v758 = vpop.f32.mrf.mxu0
        %759 = vdwg.mxu0
        %760 = vmatprep.subr.mxu0 0.0
        %761 = vmatpush1.msra.mxu0 %v395
        %762 = vmatprep.subr.mxu0 0.0
        %763 = vmatpush1.msra.mxu0 %v394
        %764 = vmatprep.subr.mxu0 0.0
        %765 = vmatpush1.msra.mxu0 %v393
        %766 = vmatprep.subr.mxu0 0.0
        %767 = vmatpush1.msra.mxu0 %v392
        %768 = vmatprep.subr.mxu0 0.0
        %769 = vmatpush1.msra.mxu0 %v391
        %770 = vmatprep.subr.mxu0 0.0
        %771 = vmatpush1.msra.mxu0 %v390
        %772 = vmatprep.subr.mxu0 0.0
        %773 = vmatpush1.msra.mxu0 %v389
        %774 = vmatprep.subr.mxu0 0.0
        %775 = vmatpush1.msra.mxu0 %v388
        %776 = vmatprep.subr.mxu0 0.0
        %777 = vmatpush1.msra.mxu0 %v387
        %778 = vmatprep.subr.mxu0 0.0
        %779 = vmatpush1.msra.mxu0 %v386
        %780 = vmatprep.subr.mxu0 0.0
        %781 = vmatpush1.msra.mxu0 %v385
        %782 = vmatprep.subr.mxu0 0.0
        %783 = vmatpush1.msra.mxu0 %v384
        %784 = vmatprep.subr.mxu0 0.0
        %785 = vmatpush1.msra.mxu0 %v383
        %786 = vmatprep.subr.mxu0 0.0
        %787 = vmatpush1.msra.mxu0 %v382
        %788 = vmatprep.subr.mxu0 0.0
        %789 = vmatpush1.msra.mxu0 %v381
        %790 = vmatprep.subr.mxu0 0.0
        %791 = vmatpush1.msra.mxu0 %v380
        %792 = vmatprep.subr.mxu0 0.0
        %793 = vmatpush2.msra.mxu0 %v411
        %794 = vmatprep.subr.mxu0 0.0
        %795 = vmatpush2.msra.mxu0 %v410
        %796 = vmatprep.subr.mxu0 0.0
        %797 = vmatpush2.msra.mxu0 %v409
        %798 = vmatprep.subr.mxu0 0.0
        %799 = vmatpush2.msra.mxu0 %v408
        %800 = vmatprep.subr.mxu0 0.0
        %801 = vmatpush2.msra.mxu0 %v407
        %802 = vmatprep.subr.mxu0 0.0
        %803 = vmatpush2.msra.mxu0 %v406
        %804 = vmatprep.subr.mxu0 0.0
        %805 = vmatpush2.msra.mxu0 %v405
        %806 = vmatprep.subr.mxu0 0.0
        %807 = vmatpush2.msra.mxu0 %v404
        %808 = vmatprep.subr.mxu0 0.0
        %809 = vmatpush2.msra.mxu0 %v403
        %810 = vmatprep.subr.mxu0 0.0
        %811 = vmatpush2.msra.mxu0 %v402
        %812 = vmatprep.subr.mxu0 0.0
        %813 = vmatpush2.msra.mxu0 %v401
        %814 = vmatprep.subr.mxu0 0.0
        %815 = vmatpush2.msra.mxu0 %v400
        %816 = vmatprep.subr.mxu0 0.0
        %817 = vmatpush2.msra.mxu0 %v399
        %818 = vmatprep.subr.mxu0 0.0
        %819 = vmatpush2.msra.mxu0 %v398
        %820 = vmatprep.subr.mxu0 0.0
        %821 = vmatpush2.msra.mxu0 %v397
        %822 = vmatprep.subr.mxu0 0.0
        %823 = vmatpush2.msra.mxu0 %v396
        %824 = vmatprep.mubr.f32.mxu0 %v209
        %825 = vmatmul.mubr.f32.gmra.mxu0 %v208
        %v826 = vpop.f32.mrf.mxu0
        %v827 = vadd.f32 %v682, %v826
        %v828 = vpop.f32.mrf.mxu0
        %829 = vmatprep.mubr.f32.mxu0 %v216
        %830 = vmatmul.mubr.f32.gmra.mxu0 %v215
        %v831 = vpop.f32.mrf.mxu0
        %v832 = vadd.f32 %v687, %v831
        %v833 = vpop.f32.mrf.mxu0
        %834 = vmatprep.mubr.f32.mxu0 %v223
        %835 = vmatmul.mubr.f32.gmra.mxu0 %v222
        %v836 = vpop.f32.mrf.mxu0
        %v837 = vadd.f32 %v692, %v836
        %v838 = vpop.f32.mrf.mxu0
        %839 = vmatprep.mubr.f32.mxu0 %v230
        %840 = vmatmul.mubr.f32.gmra.mxu0 %v229
        %v841 = vpop.f32.mrf.mxu0
        %v842 = vadd.f32 %v697, %v841
        %v843 = vpop.f32.mrf.mxu0
        %844 = vmatprep.mubr.f32.mxu0 %v237
        %845 = vmatmul.mubr.f32.gmra.mxu0 %v236
        %v846 = vpop.f32.mrf.mxu0
        %v847 = vadd.f32 %v702, %v846
        %v848 = vpop.f32.mrf.mxu0
        %849 = vmatprep.mubr.f32.mxu0 %v244
        %850 = vmatmul.mubr.f32.gmra.mxu0 %v243
        %v851 = vpop.f32.mrf.mxu0
        %v852 = vadd.f32 %v707, %v851
        %v853 = vpop.f32.mrf.mxu0
        %854 = vmatprep.mubr.f32.mxu0 %v251
        %855 = vmatmul.mubr.f32.gmra.mxu0 %v250
        %v856 = vpop.f32.mrf.mxu0
        %v857 = vadd.f32 %v712, %v856
        %v858 = vpop.f32.mrf.mxu0
        %859 = vmatprep.mubr.f32.mxu0 %v258
        %860 = vmatmul.mubr.f32.gmra.mxu0 %v257
        %v861 = vpop.f32.mrf.mxu0
        %v862 = vadd.f32 %v717, %v861
        %v863 = vpop.f32.mrf.mxu0
        %864 = vmatprep.mubr.f32.mxu0 %v265
        %865 = vmatmul.mubr.f32.gmra.mxu0 %v264
        %v866 = vpop.f32.mrf.mxu0
        %v867 = vadd.f32 %v722, %v866
        %v868 = vpop.f32.mrf.mxu0
        %869 = vmatprep.mubr.f32.mxu0 %v272
        %870 = vmatmul.mubr.f32.gmra.mxu0 %v271
        %v871 = vpop.f32.mrf.mxu0
        %v872 = vadd.f32 %v727, %v871
        %v873 = vpop.f32.mrf.mxu0
        %874 = vmatprep.mubr.f32.mxu0 %v279
        %875 = vmatmul.mubr.f32.gmra.mxu0 %v278
        %v876 = vpop.f32.mrf.mxu0
        %v877 = vadd.f32 %v732, %v876
        %v878 = vpop.f32.mrf.mxu0
        %879 = vmatprep.mubr.f32.mxu0 %v286
        %880 = vmatmul.mubr.f32.gmra.mxu0 %v285
        %v881 = vpop.f32.mrf.mxu0
        %v882 = vadd.f32 %v737, %v881
        %v883 = vpop.f32.mrf.mxu0
        %884 = vmatprep.mubr.f32.mxu0 %v293
        %885 = vmatmul.mubr.f32.gmra.mxu0 %v292
        %v886 = vpop.f32.mrf.mxu0
        %v887 = vadd.f32 %v742, %v886
        %v888 = vpop.f32.mrf.mxu0
        %889 = vmatprep.mubr.f32.mxu0 %v300
        %890 = vmatmul.mubr.f32.gmra.mxu0 %v299
        %v891 = vpop.f32.mrf.mxu0
        %v892 = vadd.f32 %v747, %v891
        %v893 = vpop.f32.mrf.mxu0
        %894 = vmatprep.mubr.f32.mxu0 %v307
        %895 = vmatmul.mubr.f32.gmra.mxu0 %v306
        %v896 = vpop.f32.mrf.mxu0
        %v897 = vadd.f32 %v752, %v896
        %v898 = vpop.f32.mrf.mxu0
        %899 = vmatprep.mubr.f32.mxu0 %v314
        %900 = vmatmul.mubr.f32.gmra.mxu0 %v313
        %v901 = vpop.f32.mrf.mxu0
        %v902 = vadd.f32 %v757, %v901
        %v903 = vpop.f32.mrf.mxu0
        %904 = vdwg.mxu0
        %905 = vmatprep.subr.mxu0 0.0
        %906 = vmatpush1.msra.mxu0 0.0
        %907 = vmatprep.subr.mxu0 0.0
        %908 = vmatpush1.msra.mxu0 0.0
        %909 = vmatprep.subr.mxu0 0.0
        %910 = vmatpush1.msra.mxu0 0.0
        %911 = vmatprep.subr.mxu0 0.0
        %912 = vmatpush1.msra.mxu0 0.0
        %913 = vmatprep.subr.mxu0 0.0
        %914 = vmatpush1.msra.mxu0 0.0
        %915 = vmatprep.subr.mxu0 0.0
        %916 = vmatpush1.msra.mxu0 0.0
        %917 = vmatprep.subr.mxu0 0.0
        %918 = vmatpush1.msra.mxu0 0.0
        %919 = vmatprep.subr.mxu0 0.0
        %920 = vmatpush1.msra.mxu0 0.0
        %921 = vmatprep.subr.mxu0 0.0
        %922 = vmatpush1.msra.mxu0 0.0
        %923 = vmatprep.subr.mxu0 0.0
        %924 = vmatpush1.msra.mxu0 0.0
        %925 = vmatprep.subr.mxu0 0.0
        %926 = vmatpush1.msra.mxu0 0.0
        %927 = vmatprep.subr.mxu0 0.0
        %928 = vmatpush1.msra.mxu0 0.0
        %929 = vmatprep.subr.mxu0 0.0
        %930 = vmatpush1.msra.mxu0 0.0
        %931 = vmatprep.subr.mxu0 0.0
        %932 = vmatpush1.msra.mxu0 0.0
        %933 = vmatprep.subr.mxu0 0.0
        %934 = vmatpush1.msra.mxu0 %v413
        %935 = vmatprep.subr.mxu0 0.0
        %936 = vmatpush1.msra.mxu0 %v412
        %937 = vmatprep.subr.mxu0 0.0
        %938 = vmatpush2.msra.mxu0 0.0
        %939 = vmatprep.subr.mxu0 0.0
        %940 = vmatpush2.msra.mxu0 0.0
        %941 = vmatprep.subr.mxu0 0.0
        %942 = vmatpush2.msra.mxu0 0.0
        %943 = vmatprep.subr.mxu0 0.0
        %944 = vmatpush2.msra.mxu0 0.0
        %945 = vmatprep.subr.mxu0 0.0
        %946 = vmatpush2.msra.mxu0 0.0
        %947 = vmatprep.subr.mxu0 0.0
        %948 = vmatpush2.msra.mxu0 0.0
        %949 = vmatprep.subr.mxu0 0.0
        %950 = vmatpush2.msra.mxu0 0.0
        %951 = vmatprep.subr.mxu0 0.0
        %952 = vmatpush2.msra.mxu0 0.0
        %953 = vmatprep.subr.mxu0 0.0
        %954 = vmatpush2.msra.mxu0 0.0
        %955 = vmatprep.subr.mxu0 0.0
        %956 = vmatpush2.msra.mxu0 0.0
        %957 = vmatprep.subr.mxu0 0.0
        %958 = vmatpush2.msra.mxu0 0.0
        %959 = vmatprep.subr.mxu0 0.0
        %960 = vmatpush2.msra.mxu0 0.0
        %961 = vmatprep.subr.mxu0 0.0
        %962 = vmatpush2.msra.mxu0 0.0
        %963 = vmatprep.subr.mxu0 0.0
        %964 = vmatpush2.msra.mxu0 0.0
        %965 = vmatprep.subr.mxu0 0.0
        %966 = vmatpush2.msra.mxu0 0.0
        %967 = vmatprep.subr.mxu0 0.0
        %968 = vmatpush2.msra.mxu0 0.0
        %969 = vmatprep.mubr.f32.mxu0 0.0
        %970 = vmatmul.mubr.f32.gmra.mxu0 %v423
        %v971 = vpop.f32.mrf.mxu0
        %v972 = vadd.f32 %v827, %v971
        %v973 = vpop.f32.mrf.mxu0
        %974 = vmatprep.mubr.f32.mxu0 0.0
        %975 = vmatmul.mubr.f32.gmra.mxu0 %v426
        %v976 = vpop.f32.mrf.mxu0
        %v977 = vadd.f32 %v832, %v976
        %v978 = vpop.f32.mrf.mxu0
        %979 = vmatprep.mubr.f32.mxu0 0.0
        %980 = vmatmul.mubr.f32.gmra.mxu0 %v429
        %v981 = vpop.f32.mrf.mxu0
        %v982 = vadd.f32 %v837, %v981
        %v983 = vpop.f32.mrf.mxu0
        %984 = vmatprep.mubr.f32.mxu0 0.0
        %985 = vmatmul.mubr.f32.gmra.mxu0 %v432
        %v986 = vpop.f32.mrf.mxu0
        %v987 = vadd.f32 %v842, %v986
        %v988 = vpop.f32.mrf.mxu0
        %989 = vmatprep.mubr.f32.mxu0 0.0
        %990 = vmatmul.mubr.f32.gmra.mxu0 %v435
        %v991 = vpop.f32.mrf.mxu0
        %v992 = vadd.f32 %v847, %v991
        %v993 = vpop.f32.mrf.mxu0
        %994 = vmatprep.mubr.f32.mxu0 0.0
        %995 = vmatmul.mubr.f32.gmra.mxu0 %v438
        %v996 = vpop.f32.mrf.mxu0
        %v997 = vadd.f32 %v852, %v996
        %v998 = vpop.f32.mrf.mxu0
        %999 = vmatprep.mubr.f32.mxu0 0.0
        %1000 = vmatmul.mubr.f32.gmra.mxu0 %v441
        %v1001 = vpop.f32.mrf.mxu0
        %v1002 = vadd.f32 %v857, %v1001
        %v1003 = vpop.f32.mrf.mxu0
        %1004 = vmatprep.mubr.f32.mxu0 0.0
        %1005 = vmatmul.mubr.f32.gmra.mxu0 %v444
        %v1006 = vpop.f32.mrf.mxu0
        %v1007 = vadd.f32 %v862, %v1006
        %v1008 = vpop.f32.mrf.mxu0
        %1009 = vmatprep.mubr.f32.mxu0 0.0
        %1010 = vmatmul.mubr.f32.gmra.mxu0 %v447
        %v1011 = vpop.f32.mrf.mxu0
        %v1012 = vadd.f32 %v867, %v1011
        %v1013 = vpop.f32.mrf.mxu0
        %1014 = vmatprep.mubr.f32.mxu0 0.0
        %1015 = vmatmul.mubr.f32.gmra.mxu0 %v450
        %v1016 = vpop.f32.mrf.mxu0
        %v1017 = vadd.f32 %v872, %v1016
        %v1018 = vpop.f32.mrf.mxu0
        %1019 = vmatprep.mubr.f32.mxu0 0.0
        %1020 = vmatmul.mubr.f32.gmra.mxu0 %v453
        %v1021 = vpop.f32.mrf.mxu0
        %v1022 = vadd.f32 %v877, %v1021
        %v1023 = vpop.f32.mrf.mxu0
        %1024 = vmatprep.mubr.f32.mxu0 0.0
        %1025 = vmatmul.mubr.f32.gmra.mxu0 %v456
        %v1026 = vpop.f32.mrf.mxu0
        %v1027 = vadd.f32 %v882, %v1026
        %v1028 = vpop.f32.mrf.mxu0
        %1029 = vmatprep.mubr.f32.mxu0 0.0
        %1030 = vmatmul.mubr.f32.gmra.mxu0 %v459
        %v1031 = vpop.f32.mrf.mxu0
        %v1032 = vadd.f32 %v887, %v1031
        %v1033 = vpop.f32.mrf.mxu0
        %1034 = vmatprep.mubr.f32.mxu0 0.0
        %1035 = vmatmul.mubr.f32.gmra.mxu0 %v462
        %v1036 = vpop.f32.mrf.mxu0
        %v1037 = vadd.f32 %v892, %v1036
        %v1038 = vpop.f32.mrf.mxu0
        %1039 = vmatprep.mubr.f32.mxu0 0.0
        %1040 = vmatmul.mubr.f32.gmra.mxu0 %v465
        %v1041 = vpop.f32.mrf.mxu0
        %v1042 = vadd.f32 %v897, %v1041
        %v1043 = vpop.f32.mrf.mxu0
        %1044 = vmatprep.mubr.f32.mxu0 0.0
        %1045 = vmatmul.mubr.f32.gmra.mxu0 %v468
        %v1046 = vpop.f32.mrf.mxu0
        %v1047 = vadd.f32 %v902, %v1046
        %v1048 = vpop.f32.mrf.mxu0
        %1049 = vdwg.mxu0
        %vm1050 = vcmask 80896
        %1051 = vst.msk [vmem:[%s192] sm:$0xff] %vm1050, %v972
        %1052 = vst.msk [vmem:[%s192 + $0x8] sm:$0xff] %vm1050, %v977
        %1053 = vst.msk [vmem:[%s192 + $0x10] sm:$0xff] %vm1050, %v982
        %1054 = vst.msk [vmem:[%s192 + $0x18] sm:$0xff] %vm1050, %v987
        %1055 = vst.msk [vmem:[%s192 + $0x20] sm:$0xff] %vm1050, %v992
        %1056 = vst.msk [vmem:[%s192 + $0x28] sm:$0xff] %vm1050, %v997
        %1057 = vst.msk [vmem:[%s192 + $0x30] sm:$0xff] %vm1050, %v1002
        %1058 = vst.msk [vmem:[%s192 + $0x38] sm:$0xff] %vm1050, %v1007
        %1059 = vst.msk [vmem:[%s192 + $0x40] sm:$0xff] %vm1050, %v1012
        %1060 = vst.msk [vmem:[%s192 + $0x48] sm:$0xff] %vm1050, %v1017
        %1061 = vst.msk [vmem:[%s192 + $0x50] sm:$0xff] %vm1050, %v1022
        %1062 = vst.msk [vmem:[%s192 + $0x58] sm:$0xff] %vm1050, %v1027
        %1063 = vst.msk [vmem:[%s192 + $0x60] sm:$0xff] %vm1050, %v1032
        %1064 = vst.msk [vmem:[%s192 + $0x68] sm:$0xff] %vm1050, %v1037
        %1065 = vst.msk [vmem:[%s192 + $0x70] sm:$0xff] %vm1050, %v1042
        %1066 = vst.msk [vmem:[%s192 + $0x78] sm:$0xff] %vm1050, %v1047
        %s1067 = sand.u32 %s93, 1
        %s1068 = sand.u32 %s93, 1
        %s1069 = smul.addr %s1068, 128
        %s1070 = scalar_lea.vmem [#allocation4], %s1069
        // Predicated region
        $region37: #{tpu_custom_call.1} parent=31 // pred_check
          %p1071 = pneg %p103
        $region38: #{tpu_custom_call.1} parent=31 // pred_check_branch
          %1073 = sbr.rel (%p1071) target = $region40
        $region39: #{tpu_custom_call.1} parent=31 // pred_region
          %s1074 = smul.u32 16, %s17
          %s1075 = ssub.s32 17, %s1074
          %p1076 = scmp.lt.s32.totalorder %s1075, 16
          %s1077 = scalar_select %p1076, %s1075, 16
          %s1078 = smul.u32 128, %s1077
          %p1079 = scmp.ne.s32.totalorder 0, %s1078
          %s1080 = smul.addr %s1074, 8
          %s1081 = scalar_lea.vmem %s3, %s1080
          // Predicated region
          $region41: #{tpu_custom_call.1} parent=39 // pred_check
            %p1082 = pneg %p1079
          $region42: #{tpu_custom_call.1} parent=39 // pred_check_branch
            %1084 = sbr.rel (%p1082) target = $region44
          $region43: #{tpu_custom_call.1} parent=39 // pred_region
            // Predicated region
            $region45: #{tpu_custom_call.1} parent=43 // pred_check
              _
            $region46: #{tpu_custom_call.1} parent=43 // pred_check_branch
              %1086 = sbr.rel (0) target = $region48
            $region47: #{tpu_custom_call.1} parent=43 // pred_region
              // Predicated region
              $region67: #{tpu_custom_call.1} parent=47 // pred_check
                _
              $region68: #{tpu_custom_call.1} parent=47 // pred_check_branch
                %1166 = sbr.rel (0) target = $region70
              $region69: #{tpu_custom_call.1} parent=47 // pred_region
                %s1167 = sshrl.u32 %s1077, 4
                // While loop
                $region71: #{tpu_custom_call.1} parent=69 // loop_pre_header
                  _
                $region72: #{tpu_custom_call.1} parent=69 // loop_header
                  %s1169 = sphi 0, %s1171
                  %p1170 = scmp.ge.s32.totalorder %s1169, %s1167
                  %s1174 = sphi 0, %s1211
                  %s1175 = sphi %s1070, %s1214
                  %s1176 = sphi %s1081, %s1215
                $region73: #{tpu_custom_call.1} parent=69 // loop_header_branch
                  %1173 = sbr.rel (%p1170) target = $region77
                $region74: #{tpu_custom_call.1} parent=69 // loop_body
                  %v1177 = vld [vmem:[%s1175] sm:$0xff]
                  %1178 = vst [vmem:[%s1176] sm:$0xff] %v1177
                  %v1179 = vld [vmem:[%s1175 + $0x8] sm:$0xff]
                  %1180 = vst [vmem:[%s1176 + $0x8] sm:$0xff] %v1179
                  %v1181 = vld [vmem:[%s1175 + $0x10] sm:$0xff]
                  %1182 = vst [vmem:[%s1176 + $0x10] sm:$0xff] %v1181
                  %v1183 = vld [vmem:[%s1175 + $0x18] sm:$0xff]
                  %1184 = vst [vmem:[%s1176 + $0x18] sm:$0xff] %v1183
                  %v1185 = vld [vmem:[%s1175 + $0x20] sm:$0xff]
                  %1186 = vst [vmem:[%s1176 + $0x20] sm:$0xff] %v1185
                  %v1187 = vld [vmem:[%s1175 + $0x28] sm:$0xff]
                  %1188 = vst [vmem:[%s1176 + $0x28] sm:$0xff] %v1187
                  %v1189 = vld [vmem:[%s1175 + $0x30] sm:$0xff]
                  %1190 = vst [vmem:[%s1176 + $0x30] sm:$0xff] %v1189
                  %v1191 = vld [vmem:[%s1175 + $0x38] sm:$0xff]
                  %1192 = vst [vmem:[%s1176 + $0x38] sm:$0xff] %v1191
                  %v1193 = vld [vmem:[%s1175 + $0x40] sm:$0xff]
                  %1194 = vst [vmem:[%s1176 + $0x40] sm:$0xff] %v1193
                  %v1195 = vld [vmem:[%s1175 + $0x48] sm:$0xff]
                  %1196 = vst [vmem:[%s1176 + $0x48] sm:$0xff] %v1195
                  %v1197 = vld [vmem:[%s1175 + $0x50] sm:$0xff]
                  %1198 = vst [vmem:[%s1176 + $0x50] sm:$0xff] %v1197
                  %v1199 = vld [vmem:[%s1175 + $0x58] sm:$0xff]
                  %1200 = vst [vmem:[%s1176 + $0x58] sm:$0xff] %v1199
                  %v1201 = vld [vmem:[%s1175 + $0x60] sm:$0xff]
                  %1202 = vst [vmem:[%s1176 + $0x60] sm:$0xff] %v1201
                  %v1203 = vld [vmem:[%s1175 + $0x68] sm:$0xff]
                  %1204 = vst [vmem:[%s1176 + $0x68] sm:$0xff] %v1203
                  %v1205 = vld [vmem:[%s1175 + $0x70] sm:$0xff]
                  %1206 = vst [vmem:[%s1176 + $0x70] sm:$0xff] %v1205
                  %v1207 = vld [vmem:[%s1175 + $0x78] sm:$0xff]
                  %1208 = vst [vmem:[%s1176 + $0x78] sm:$0xff] %v1207
                  %s1209 = sadd.s32 1, %s1174
                  %p1210 = scmp.ge.s32.totalorder %s1209, %s1167
                  %s1211 = scalar_select %p1210, 0, %s1209
                  %s1212 = smul.u32 %s1211, 128
                  %s1213 = smul.u32 %s1211, 128
                  %s1214 = scalar_lea.vmem %s1070, %s1212 [#allocation4]
                  %s1215 = scalar_lea.vmem %s1081, %s1213
                $region75: #{tpu_custom_call.1} parent=69 // loop_footer
                  %s1171 = sadd.s32 %s1169, 1
                $region76: #{tpu_custom_call.1} parent=69 // loop_footer_branch
                  %1168 = sbr.rel target = $region72
                $region77: #{tpu_custom_call.1} parent=69 // loop_exit
                  _
                %s1216 = sshrl.u32 %s1077, 4
                %s1217 = sand.u32 %s1077, 15
                %s1218 = smul.u32 %s1216, 16
                %s1219 = smul.u32 8, %s1218
                %s1220 = scalar_lea.vmem %s1070, %s1219 [#allocation4]
                %s1221 = smul.u32 8, %s1218
                %s1222 = scalar_lea.vmem %s1081, %s1221
                // While loop
                $region78: #{tpu_custom_call.1} parent=69 // loop_pre_header
                  _
                $region79: #{tpu_custom_call.1} parent=69 // loop_header
                  %s1224 = sphi 0, %s1226
                  %p1225 = scmp.ge.s32.totalorder %s1224, %s1217
                  %s1229 = sphi 0, %s1236
                  %s1230 = sphi %s1220, %s1239
                  %s1231 = sphi %s1222, %s1240
                $region80: #{tpu_custom_call.1} parent=69 // loop_header_branch
                  %1228 = sbr.rel (%p1225) target = $region84
                $region81: #{tpu_custom_call.1} parent=69 // loop_body
                  %v1232 = vld [vmem:[%s1230] sm:$0xff]
                  %1233 = vst [vmem:[%s1231] sm:$0xff] %v1232
                  %s1234 = sadd.s32 1, %s1229
                  %p1235 = scmp.ge.s32.totalorder %s1234, %s1217
                  %s1236 = scalar_select %p1235, 0, %s1234
                  %s1237 = smul.u32 %s1236, 8
                  %s1238 = smul.u32 %s1236, 8
                  %s1239 = scalar_lea.vmem %s1220, %s1237 [#allocation4]
                  %s1240 = scalar_lea.vmem %s1222, %s1238
                $region82: #{tpu_custom_call.1} parent=69 // loop_footer
                  %s1226 = sadd.s32 %s1224, 1
                $region83: #{tpu_custom_call.1} parent=69 // loop_footer_branch
                  %1223 = sbr.rel target = $region79
                $region84: #{tpu_custom_call.1} parent=69 // loop_exit
                  _
              $region70: #{tpu_custom_call.1} parent=47 // pred_fallthru
                _
              // Predicated region
              $region85: #{tpu_custom_call.1} parent=47 // pred_check
                _
              $region86: #{tpu_custom_call.1} parent=47 // pred_check_branch
                %1242 = sbr.rel target = $region88
              $region87: #{tpu_custom_call.1} parent=47 // pred_region
                _
              $region88: #{tpu_custom_call.1} parent=47 // pred_fallthru
                _
            $region48: #{tpu_custom_call.1} parent=43 // pred_fallthru
              _
            // Predicated region
            $region49: #{tpu_custom_call.1} parent=43 // pred_check
              _
            $region50: #{tpu_custom_call.1} parent=43 // pred_check_branch
              %1088 = sbr.rel target = $region52
            $region51: #{tpu_custom_call.1} parent=43 // pred_region
              %s1090 = ssub.s32 256, 1
              %s1091 = sshrl.u32 %s1077, 4
              // While loop
              $region53: #{tpu_custom_call.1} parent=51 // loop_pre_header
                _
              $region54: #{tpu_custom_call.1} parent=51 // loop_header
                %s1093 = sphi 0, %s1095
                %p1094 = scmp.ge.s32.totalorder %s1093, %s1091
                %s1098 = sphi 0, %s1135
                %s1099 = sphi %s1070, %s1138
                %s1100 = sphi %s1081, %s1139
              $region55: #{tpu_custom_call.1} parent=51 // loop_header_branch
                %1097 = sbr.rel (%p1094) target = $region59
              $region56: #{tpu_custom_call.1} parent=51 // loop_body
                %v1101 = vld [vmem:[%s1099] sm:%s1090]
                %1102 = vst [vmem:[%s1100] sm:%s1090] %v1101
                %v1103 = vld [vmem:[%s1099 + $0x8] sm:%s1090]
                %1104 = vst [vmem:[%s1100 + $0x8] sm:%s1090] %v1103
                %v1105 = vld [vmem:[%s1099 + $0x10] sm:%s1090]
                %1106 = vst [vmem:[%s1100 + $0x10] sm:%s1090] %v1105
                %v1107 = vld [vmem:[%s1099 + $0x18] sm:%s1090]
                %1108 = vst [vmem:[%s1100 + $0x18] sm:%s1090] %v1107
                %v1109 = vld [vmem:[%s1099 + $0x20] sm:%s1090]
                %1110 = vst [vmem:[%s1100 + $0x20] sm:%s1090] %v1109
                %v1111 = vld [vmem:[%s1099 + $0x28] sm:%s1090]
                %1112 = vst [vmem:[%s1100 + $0x28] sm:%s1090] %v1111
                %v1113 = vld [vmem:[%s1099 + $0x30] sm:%s1090]
                %1114 = vst [vmem:[%s1100 + $0x30] sm:%s1090] %v1113
                %v1115 = vld [vmem:[%s1099 + $0x38] sm:%s1090]
                %1116 = vst [vmem:[%s1100 + $0x38] sm:%s1090] %v1115
                %v1117 = vld [vmem:[%s1099 + $0x40] sm:%s1090]
                %1118 = vst [vmem:[%s1100 + $0x40] sm:%s1090] %v1117
                %v1119 = vld [vmem:[%s1099 + $0x48] sm:%s1090]
                %1120 = vst [vmem:[%s1100 + $0x48] sm:%s1090] %v1119
                %v1121 = vld [vmem:[%s1099 + $0x50] sm:%s1090]
                %1122 = vst [vmem:[%s1100 + $0x50] sm:%s1090] %v1121
                %v1123 = vld [vmem:[%s1099 + $0x58] sm:%s1090]
                %1124 = vst [vmem:[%s1100 + $0x58] sm:%s1090] %v1123
                %v1125 = vld [vmem:[%s1099 + $0x60] sm:%s1090]
                %1126 = vst [vmem:[%s1100 + $0x60] sm:%s1090] %v1125
                %v1127 = vld [vmem:[%s1099 + $0x68] sm:%s1090]
                %1128 = vst [vmem:[%s1100 + $0x68] sm:%s1090] %v1127
                %v1129 = vld [vmem:[%s1099 + $0x70] sm:%s1090]
                %1130 = vst [vmem:[%s1100 + $0x70] sm:%s1090] %v1129
                %v1131 = vld [vmem:[%s1099 + $0x78] sm:%s1090]
                %1132 = vst [vmem:[%s1100 + $0x78] sm:%s1090] %v1131
                %s1133 = sadd.s32 1, %s1098
                %p1134 = scmp.ge.s32.totalorder %s1133, %s1091
                %s1135 = scalar_select %p1134, 0, %s1133
                %s1136 = smul.u32 %s1135, 128
                %s1137 = smul.u32 %s1135, 128
                %s1138 = scalar_lea.vmem %s1070, %s1136 [#allocation4]
                %s1139 = scalar_lea.vmem %s1081, %s1137
              $region57: #{tpu_custom_call.1} parent=51 // loop_footer
                %s1095 = sadd.s32 %s1093, 1
              $region58: #{tpu_custom_call.1} parent=51 // loop_footer_branch
                %1092 = sbr.rel target = $region54
              $region59: #{tpu_custom_call.1} parent=51 // loop_exit
                _
              %s1140 = sshrl.u32 %s1077, 4
              %s1141 = sand.u32 %s1077, 15
              %s1142 = smul.u32 %s1140, 16
              %s1143 = smul.u32 8, %s1142
              %s1144 = scalar_lea.vmem %s1070, %s1143 [#allocation4]
              %s1145 = smul.u32 8, %s1142
              %s1146 = scalar_lea.vmem %s1081, %s1145
              // While loop
              $region60: #{tpu_custom_call.1} parent=51 // loop_pre_header
                _
              $region61: #{tpu_custom_call.1} parent=51 // loop_header
                %s1148 = sphi 0, %s1150
                %p1149 = scmp.ge.s32.totalorder %s1148, %s1141
                %s1153 = sphi 0, %s1160
                %s1154 = sphi %s1144, %s1163
                %s1155 = sphi %s1146, %s1164
              $region62: #{tpu_custom_call.1} parent=51 // loop_header_branch
                %1152 = sbr.rel (%p1149) target = $region66
              $region63: #{tpu_custom_call.1} parent=51 // loop_body
                %v1156 = vld [vmem:[%s1154] sm:%s1090]
                %1157 = vst [vmem:[%s1155] sm:%s1090] %v1156
                %s1158 = sadd.s32 1, %s1153
                %p1159 = scmp.ge.s32.totalorder %s1158, %s1141
                %s1160 = scalar_select %p1159, 0, %s1158
                %s1161 = smul.u32 %s1160, 8
                %s1162 = smul.u32 %s1160, 8
                %s1163 = scalar_lea.vmem %s1144, %s1161 [#allocation4]
                %s1164 = scalar_lea.vmem %s1146, %s1162
              $region64: #{tpu_custom_call.1} parent=51 // loop_footer
                %s1150 = sadd.s32 %s1148, 1
              $region65: #{tpu_custom_call.1} parent=51 // loop_footer_branch
                %1147 = sbr.rel target = $region61
              $region66: #{tpu_custom_call.1} parent=51 // loop_exit
                _
            $region52: #{tpu_custom_call.1} parent=43 // pred_fallthru
              _
          $region44: #{tpu_custom_call.1} parent=39 // pred_fallthru
            _
          %1243 = vnop
        $region40: #{tpu_custom_call.1} parent=31 // pred_fallthru
          _
      $region32: #{tpu_custom_call.1} parent=5 // pred_fallthru
        _
      %p1244 = scmp.le.s32.totalorder 2, %s12
      // Predicated region
      $region89: #{tpu_custom_call.1} parent=5 // pred_check
        %p1245 = pneg %p1244
      $region90: #{tpu_custom_call.1} parent=5 // pred_check_branch
        %1247 = sbr.rel (%p1245) target = $region92
      $region91: #{tpu_custom_call.1} parent=5 // pred_region
        %s1248 = ssub.s32 %s12, 2
        // Predicated region
        $region93: #{tpu_custom_call.1} parent=91 // pred_check
          %p1249 = pneg %p109
        $region94: #{tpu_custom_call.1} parent=91 // pred_check_branch
          %1251 = sbr.rel (%p1249) target = $region96
        $region95: #{tpu_custom_call.1} parent=91 // pred_region
          %s1252 = sand.u32 %s94, 1
          %s1253 = sand.u32 %s94, 1
          %s1254 = smul.addr %s1253, 128
          %s1255 = scalar_lea.vmem [#allocation4], %s1254
        $region96: #{tpu_custom_call.1} parent=91 // pred_fallthru
          _
      $region92: #{tpu_custom_call.1} parent=5 // pred_fallthru
        _
    $region6: #{tpu_custom_call.1} parent=1 // loop_footer
      %s16 = sadd.s32 1, %s12
    $region7: #{tpu_custom_call.1} parent=1 // loop_footer_branch
      %11 = sbr.rel target = $region3
    $region8: #{tpu_custom_call.1} parent=1 // loop_exit
      _
    %1256 = vsyncpa [#allocation3], 1
    %s1257 = scalar_lea.sflag [#allocation3], 1
    %1258 = vsyncpa %s1257, 1

</llo_original>
